<compile_context>
chip_gen: v5e
topology: v5e:2x2
jax: 0.10.0
libtpu: 0.0.40
codegen_flags: <defaults>
</compile_context>

<pallas_src>
import functools

import jax
import jax.numpy as jnp
from jax.experimental import pallas as pl
from jax.experimental.pallas import tpu as pltpu


def self_attention_kernel(
    a_ref,       # (B, N, N)          normalized adjacency A_hat
    x_ref,       # (B, N, F)          node features
    wqkvb_ref,   # (F + 1, 2*d_k+d_v) fused [W_Q | W_K | W_V] with bias as last row
    wob_ref,     # (d_v + 1, F)       [W_O ; b_O]
    out_ref,     # (B, N * F)         attn_out, lane-dense slab
    attn_ref,    # (B, N * N)         attention weights, lane-dense slab
    *,
    B, N, F, d_k, d_v,
):
    a = a_ref[...]   # (B, N, N)
    x = x_ref[...]   # (B, N, F)

    # Shared graph aggregation A_hat @ X for all graphs (identical for Q, K, V).
    ax = jnp.einsum("bij,bjf->bif", a, x, preferred_element_type=jnp.float32)

    # Fused Q|K|V GraphConv projection: one stacked (B*N, F) @ (F, 2*d_k+d_v) matmul.
    # (B, N, F) -> (B*N, F) is a leading-dim collapse (N == sublane tile): layout-free.
    ax_flat = ax.reshape(B * N, F)
    w_qkv = wqkvb_ref[0:F, :]
    b_qkv = wqkvb_ref[F:F + 1, :]
    qkv = jnp.dot(ax_flat, w_qkv, preferred_element_type=jnp.float32) + b_qkv
    qkv = qkv.reshape(B, N, 2 * d_k + d_v)
    q = qkv[:, :, 0:d_k]
    k = qkv[:, :, d_k:2 * d_k]
    v = qkv[:, :, 2 * d_k:2 * d_k + d_v]

    # Scaled dot-product scores: contract last-vs-last dims (no k.T / XLU transpose).
    scale = 1.0 / jnp.sqrt(jnp.float32(d_k))
    scores = jnp.einsum("bqd,bkd->bqk", q, k,
                        preferred_element_type=jnp.float32) * scale

    # Numerically stable softmax.  Exact division: attn is a user-visible output and
    # its rows must sum to 1 (no approx-reciprocal accuracy tax).
    m = jnp.max(scores, axis=-1, keepdims=True)
    e = jnp.exp(scores - m)
    attn = e / jnp.sum(e, axis=-1, keepdims=True)          # (B, N, N)

    # attn_out = A_hat @ (attn @ V) @ W_O + b_O  (output GraphConv).
    av = jnp.einsum("bqk,bkd->bqd", attn, v, preferred_element_type=jnp.float32)
    aav = jnp.einsum("bij,bjd->bid", a, av, preferred_element_type=jnp.float32)
    w_o = wob_ref[0:d_v, :]
    b_o = wob_ref[d_v:d_v + 1, :]
    out = jnp.dot(aav.reshape(B * N, d_v), w_o,
                  preferred_element_type=jnp.float32) + b_o
    out3 = out.reshape(B, N, F)                              # (B, N, F)

    # Lane-dense writeback: pack each graph's (N, F) / (N, N) block into one row of a
    # (B, N*F) / (B, N*N) slab via static lane-offset stores (no vector reshape that
    # would move data between sublanes and lanes).
    for n in range(N):
        out_ref[:, n * F:(n + 1) * F] = out3[:, n, :]
        attn_ref[:, n * N:(n + 1) * N] = attn[:, n, :]


def self_attention(a_hat, x, params, d_k):
    """a_hat: (B, N, N), x: (B, N, F) -> (attn_out (B, N, F), attn (B, N, N))."""
    B, N, F = x.shape
    d_v = params["W_V"].shape[1]

    # Fuse Q/K/V weights & biases, then append biases as an extra weight row so the
    # kernel sees only 2 parameter slabs (fewer tiny DMAs in the pipeline prologue).
    w_qkv = jnp.concatenate([params["W_Q"], params["W_K"], params["W_V"]], axis=1)
    b_qkv = jnp.concatenate(
        [params["b_Q"], params["b_K"], params["b_V"]], axis=0).reshape(1, -1)
    wqkvb = jnp.concatenate([w_qkv, b_qkv], axis=0)                  # (F+1, 2dk+dv)
    wob = jnp.concatenate([params["W_O"], params["b_O"].reshape(1, -1)], axis=0)

    kernel = functools.partial(self_attention_kernel,
                               B=B, N=N, F=F, d_k=d_k, d_v=d_v)

    vmem = pl.BlockSpec(memory_space=pltpu.MemorySpace.VMEM)
    out_flat, attn_flat = pl.pallas_call(
        kernel,
        out_shape=(
            jax.ShapeDtypeStruct((B, N * F), jnp.float32),   # lane-dense: 128 lanes
            jax.ShapeDtypeStruct((B, N * N), jnp.float32),   # lane-dense: 64 lanes
        ),
        in_specs=[vmem, vmem, vmem, vmem],
        out_specs=(vmem, vmem),
    )(a_hat, x, wqkvb, wob)

    # Wrapper-side reshape back to the module's natural output shapes (free in XLA).
    return out_flat.reshape(B, N, F), attn_flat.reshape(B, N, N)


def reference(a_hat, x, params, d_k):
    def single(a, xi):
        ax = a @ xi
        q = ax @ params["W_Q"] + params["b_Q"]
        k = ax @ params["W_K"] + params["b_K"]
        v = ax @ params["W_V"] + params["b_V"]
        scores = (q @ k.T) / jnp.sqrt(jnp.float32(d_k))
        attn = jax.nn.softmax(scores, axis=-1)
        out = a @ (attn @ v) @ params["W_O"] + params["b_O"]
        return out, attn

    return jax.vmap(single)(a_hat, x)


def make_normalized_adjacency(key, batch, n_nodes):
    """Dense A_hat = D_in^{-1/2} M D_out^{-1/2} for random graphs with self-loops."""
    probs = jax.random.uniform(key, (batch, n_nodes, n_nodes))
    m = (probs < 0.35).astype(jnp.float32)
    m = jnp.minimum(m + jnp.eye(n_nodes, dtype=jnp.float32), 1.0)   # self-loops
    out_deg = jnp.maximum(jnp.sum(m, axis=1), 1.0)   # out-degree of source nodes
    in_deg = jnp.maximum(jnp.sum(m, axis=2), 1.0)    # in-degree of dest nodes
    return (in_deg[:, :, None] ** -0.5) * m * (out_deg[:, None, :] ** -0.5)


if __name__ == "__main__":
    B, N, in_feats, d_k, d_v = 4, 8, 16, 16, 16   # N*F = 128 -> full-lane output slab

    key = jax.random.PRNGKey(0)
    k_g, k_x, k_q, k_k, k_v, k_o, k_b = jax.random.split(key, 7)
    kb_q, kb_k, kb_v, kb_o = jax.random.split(k_b, 4)

    a_hat = make_normalized_adjacency(k_g, B, N)
    x = jax.random.normal(k_x, (B, N, in_feats), dtype=jnp.float32)

    # GraphConv parameters: weight (in, out), bias (out,).  Non-zero biases so the
    # fused bias-row path is actually exercised.
    params = {
        "W_Q": jax.random.normal(k_q, (in_feats, d_k), dtype=jnp.float32) * 0.1,
        "b_Q": jax.random.normal(kb_q, (d_k,), dtype=jnp.float32) * 0.1,
        "W_K": jax.random.normal(k_k, (in_feats, d_k), dtype=jnp.float32) * 0.1,
        "b_K": jax.random.normal(kb_k, (d_k,), dtype=jnp.float32) * 0.1,
        "W_V": jax.random.normal(k_v, (in_feats, d_v), dtype=jnp.float32) * 0.1,
        "b_V": jax.random.normal(kb_v, (d_v,), dtype=jnp.float32) * 0.1,
        "W_O": jax.random.normal(k_o, (d_v, in_feats), dtype=jnp.float32) * 0.1,
        "b_O": jax.random.normal(kb_o, (in_feats,), dtype=jnp.float32) * 0.1,
    }

    attn_out, attn = self_attention(a_hat, x, params, d_k)
    jax.block_until_ready((attn_out, attn))

    ref_out, ref_attn = reference(a_hat, x, params, d_k)

    # Exact softmax division -> attention rows sum to 1 at f32 precision.
    assert jnp.allclose(jnp.sum(attn, axis=-1), 1.0, atol=1e-5), "attn rows must sum to 1"
    # Remaining tolerance covers MXU default-precision matmul rounding only.
    assert jnp.allclose(attn, ref_attn, atol=2e-3, rtol=2e-3), "attn mismatch"
    assert jnp.allclose(attn_out, ref_out, atol=5e-3, rtol=5e-3), "attn_out mismatch"

    print("KERNEL_OK")
</pallas_src>

<mosaic_0001>
module attributes {stable_mosaic.version = 11 : i64} {
  func.func @self_attention_kernel(%arg0: memref<4x8x8xf32, #tpu.memory_space<vmem>>, %arg1: memref<4x8x16xf32, #tpu.memory_space<vmem>>, %arg2: memref<17x48xf32, #tpu.memory_space<vmem>>, %arg3: memref<17x16xf32, #tpu.memory_space<vmem>>, %arg4: memref<4x128xf32, #tpu.memory_space<vmem>>, %arg5: memref<4x64xf32, #tpu.memory_space<vmem>>) attributes {dimension_semantics = [], scalar_prefetch = 0 : i64, scratch_operands = 0 : i64, tpu.core_type = #tpu.core_type<tc>} {
    %c0 = arith.constant 0 : index
    %c0_0 = arith.constant 0 : index
    %c0_1 = arith.constant 0 : index
    %0 = vector.load %arg0[%c0, %c0_0, %c0_1] : memref<4x8x8xf32, #tpu.memory_space<vmem>>, vector<4x8x8xf32>
    %c0_2 = arith.constant 0 : index
    %c0_3 = arith.constant 0 : index
    %c0_4 = arith.constant 0 : index
    %1 = vector.load %arg1[%c0_2, %c0_3, %c0_4] : memref<4x8x16xf32, #tpu.memory_space<vmem>>, vector<4x8x16xf32>
    "tpu.trace_start"() <{level = 10 : i32, message = "bij,bjf->bif"}> : () -> ()
    %cst = arith.constant dense<0.000000e+00> : vector<4x8x16xf32>
    %2 = tpu.matmul %0, %1, %cst {dimension_numbers = #tpu.dot_dimension_numbers<[2], [1], [1], [2], [0, 0, 0, 1, 1, 2], [0], [0]>} : vector<4x8x8xf32>, vector<4x8x16xf32>, vector<4x8x16xf32> -> vector<4x8x16xf32>
    "tpu.trace_stop"() : () -> ()
    %3 = vector.shape_cast %2 : vector<4x8x16xf32> to vector<32x16xf32>
    %c0_5 = arith.constant 0 : index
    %c0_6 = arith.constant 0 : index
    %4 = vector.load %arg2[%c0_5, %c0_6] : memref<17x48xf32, #tpu.memory_space<vmem>>, vector<16x48xf32>
    %c16 = arith.constant 16 : index
    %c0_7 = arith.constant 0 : index
    %5 = vector.load %arg2[%c16, %c0_7] : memref<17x48xf32, #tpu.memory_space<vmem>>, vector<1x48xf32>
    %cst_8 = arith.constant dense<0.000000e+00> : vector<32x48xf32>
    %6 = tpu.matmul %3, %4, %cst_8 {dimension_numbers = #tpu.dot_dimension_numbers<[1], [0], [0], [1], [0, 0, 1, 1], [], []>} : vector<32x16xf32>, vector<16x48xf32>, vector<32x48xf32> -> vector<32x48xf32>
    %7 = vector.broadcast %5 : vector<1x48xf32> to vector<32x48xf32>
    %8 = arith.addf %6, %7 : vector<32x48xf32>
    %9 = vector.shape_cast %8 : vector<32x48xf32> to vector<4x8x48xf32>
    %10 = vector.extract_strided_slice %9 {offsets = [0, 0, 0], sizes = [4, 8, 16], strides = [1, 1, 1]} : vector<4x8x48xf32> to vector<4x8x16xf32>
    %11 = vector.extract_strided_slice %9 {offsets = [0, 0, 16], sizes = [4, 8, 16], strides = [1, 1, 1]} : vector<4x8x48xf32> to vector<4x8x16xf32>
    %12 = vector.extract_strided_slice %9 {offsets = [0, 0, 32], sizes = [4, 8, 16], strides = [1, 1, 1]} : vector<4x8x48xf32> to vector<4x8x16xf32>
    %cst_9 = arith.constant 1.600000e+01 : f32
    %13 = math.sqrt %cst_9 : f32
    %cst_10 = arith.constant 1.000000e+00 : f32
    %14 = arith.divf %cst_10, %13 : f32
    "tpu.trace_start"() <{level = 10 : i32, message = "bqd,bkd->bqk"}> : () -> ()
    %cst_11 = arith.constant dense<0.000000e+00> : vector<4x8x8xf32>
    %15 = tpu.matmul %10, %11, %cst_11 {dimension_numbers = #tpu.dot_dimension_numbers<[2], [2], [1], [1], [0, 0, 0, 1, 1, 1], [0], [0]>} : vector<4x8x16xf32>, vector<4x8x16xf32>, vector<4x8x8xf32> -> vector<4x8x8xf32>
    "tpu.trace_stop"() : () -> ()
    %16 = vector.broadcast %14 : f32 to vector<4x8x8xf32>
    %17 = arith.mulf %15, %16 : vector<4x8x8xf32>
    %cst_12 = arith.constant dense<0xFF800000> : vector<4x8xf32>
    %18 = vector.multi_reduction <maximumf>, %17, %cst_12 [2] : vector<4x8x8xf32> to vector<4x8xf32>
    %19 = vector.shape_cast %18 : vector<4x8xf32> to vector<4x8x1xf32>
    %20 = vector.broadcast %19 : vector<4x8x1xf32> to vector<4x8x8xf32>
    %21 = arith.subf %17, %20 : vector<4x8x8xf32>
    %22 = math.exp %21 : vector<4x8x8xf32>
    %cst_13 = arith.constant dense<0.000000e+00> : vector<4x8xf32>
    %23 = vector.multi_reduction <add>, %22, %cst_13 [2] : vector<4x8x8xf32> to vector<4x8xf32>
    %24 = vector.shape_cast %23 : vector<4x8xf32> to vector<4x8x1xf32>
    %25 = vector.broadcast %24 : vector<4x8x1xf32> to vector<4x8x8xf32>
    %26 = arith.divf %22, %25 : vector<4x8x8xf32>
    "tpu.trace_start"() <{level = 10 : i32, message = "bqk,bkd->bqd"}> : () -> ()
    %cst_14 = arith.constant dense<0.000000e+00> : vector<4x8x16xf32>
    %27 = tpu.matmul %26, %12, %cst_14 {dimension_numbers = #tpu.dot_dimension_numbers<[2], [1], [1], [2], [0, 0, 0, 1, 1, 2], [0], [0]>} : vector<4x8x8xf32>, vector<4x8x16xf32>, vector<4x8x16xf32> -> vector<4x8x16xf32>
    "tpu.trace_stop"() : () -> ()
    "tpu.trace_start"() <{level = 10 : i32, message = "bij,bjd->bid"}> : () -> ()
    %cst_15 = arith.constant dense<0.000000e+00> : vector<4x8x16xf32>
    %28 = tpu.matmul %0, %27, %cst_15 {dimension_numbers = #tpu.dot_dimension_numbers<[2], [1], [1], [2], [0, 0, 0, 1, 1, 2], [0], [0]>} : vector<4x8x8xf32>, vector<4x8x16xf32>, vector<4x8x16xf32> -> vector<4x8x16xf32>
    "tpu.trace_stop"() : () -> ()
    %c0_16 = arith.constant 0 : index
    %c0_17 = arith.constant 0 : index
    %29 = vector.load %arg3[%c0_16, %c0_17] : memref<17x16xf32, #tpu.memory_space<vmem>>, vector<16x16xf32>
    %c16_18 = arith.constant 16 : index
    %c0_19 = arith.constant 0 : index
    %30 = vector.load %arg3[%c16_18, %c0_19] : memref<17x16xf32, #tpu.memory_space<vmem>>, vector<1x16xf32>
    %31 = vector.shape_cast %28 : vector<4x8x16xf32> to vector<32x16xf32>
    %cst_20 = arith.constant dense<0.000000e+00> : vector<32x16xf32>
    %32 = tpu.matmul %31, %29, %cst_20 {dimension_numbers = #tpu.dot_dimension_numbers<[1], [0], [0], [1], [0, 0, 1, 1], [], []>} : vector<32x16xf32>, vector<16x16xf32>, vector<32x16xf32> -> vector<32x16xf32>
    %33 = vector.broadcast %30 : vector<1x16xf32> to vector<32x16xf32>
    %34 = arith.addf %32, %33 : vector<32x16xf32>
    %35 = vector.shape_cast %34 : vector<32x16xf32> to vector<4x8x16xf32>
    %36 = vector.extract_strided_slice %35 {offsets = [0, 0, 0], sizes = [4, 1, 16], strides = [1, 1, 1]} : vector<4x8x16xf32> to vector<4x1x16xf32>
    %37 = vector.shape_cast %36 : vector<4x1x16xf32> to vector<4x16xf32>
    %c0_21 = arith.constant 0 : index
    %c0_22 = arith.constant 0 : index
    %38 = vector.load %arg4[%c0_21, %c0_22] : memref<4x128xf32, #tpu.memory_space<vmem>>, vector<4x16xf32>
    tpu.vector_store %arg4[%c0_21, %c0_22], %37 {strides = array<i32>} : memref<4x128xf32, #tpu.memory_space<vmem>>, vector<4x16xf32>,
    %39 = vector.extract_strided_slice %26 {offsets = [0, 0, 0], sizes = [4, 1, 8], strides = [1, 1, 1]} : vector<4x8x8xf32> to vector<4x1x8xf32>
    %40 = vector.shape_cast %39 : vector<4x1x8xf32> to vector<4x8xf32>
    %c0_23 = arith.constant 0 : index
    %c0_24 = arith.constant 0 : index
    %41 = vector.load %arg5[%c0_23, %c0_24] : memref<4x64xf32, #tpu.memory_space<vmem>>, vector<4x8xf32>
    tpu.vector_store %arg5[%c0_23, %c0_24], %40 {strides = array<i32>} : memref<4x64xf32, #tpu.memory_space<vmem>>, vector<4x8xf32>,
    %42 = vector.extract_strided_slice %35 {offsets = [0, 1, 0], sizes = [4, 1, 16], strides = [1, 1, 1]} : vector<4x8x16xf32> to vector<4x1x16xf32>
    %43 = vector.shape_cast %42 : vector<4x1x16xf32> to vector<4x16xf32>
    %c0_25 = arith.constant 0 : index
    %c16_26 = arith.constant 16 : index
    %44 = vector.load %arg4[%c0_25, %c16_26] : memref<4x128xf32, #tpu.memory_space<vmem>>, vector<4x16xf32>
    tpu.vector_store %arg4[%c0_25, %c16_26], %43 {strides = array<i32>} : memref<4x128xf32, #tpu.memory_space<vmem>>, vector<4x16xf32>,
    %45 = vector.extract_strided_slice %26 {offsets = [0, 1, 0], sizes = [4, 1, 8], strides = [1, 1, 1]} : vector<4x8x8xf32> to vector<4x1x8xf32>
    %46 = vector.shape_cast %45 : vector<4x1x8xf32> to vector<4x8xf32>
    %c0_27 = arith.constant 0 : index
    %c8 = arith.constant 8 : index
    %47 = vector.load %arg5[%c0_27, %c8] : memref<4x64xf32, #tpu.memory_space<vmem>>, vector<4x8xf32>
    tpu.vector_store %arg5[%c0_27, %c8], %46 {strides = array<i32>} : memref<4x64xf32, #tpu.memory_space<vmem>>, vector<4x8xf32>,
    %48 = vector.extract_strided_slice %35 {offsets = [0, 2, 0], sizes = [4, 1, 16], strides = [1, 1, 1]} : vector<4x8x16xf32> to vector<4x1x16xf32>
    %49 = vector.shape_cast %48 : vector<4x1x16xf32> to vector<4x16xf32>
    %c0_28 = arith.constant 0 : index
    %c32 = arith.constant 32 : index
    %50 = vector.load %arg4[%c0_28, %c32] : memref<4x128xf32, #tpu.memory_space<vmem>>, vector<4x16xf32>
    tpu.vector_store %arg4[%c0_28, %c32], %49 {strides = array<i32>} : memref<4x128xf32, #tpu.memory_space<vmem>>, vector<4x16xf32>,
    %51 = vector.extract_strided_slice %26 {offsets = [0, 2, 0], sizes = [4, 1, 8], strides = [1, 1, 1]} : vector<4x8x8xf32> to vector<4x1x8xf32>
    %52 = vector.shape_cast %51 : vector<4x1x8xf32> to vector<4x8xf32>
    %c0_29 = arith.constant 0 : index
    %c16_30 = arith.constant 16 : index
    %53 = vector.load %arg5[%c0_29, %c16_30] : memref<4x64xf32, #tpu.memory_space<vmem>>, vector<4x8xf32>
    tpu.vector_store %arg5[%c0_29, %c16_30], %52 {strides = array<i32>} : memref<4x64xf32, #tpu.memory_space<vmem>>, vector<4x8xf32>,
    %54 = vector.extract_strided_slice %35 {offsets = [0, 3, 0], sizes = [4, 1, 16], strides = [1, 1, 1]} : vector<4x8x16xf32> to vector<4x1x16xf32>
    %55 = vector.shape_cast %54 : vector<4x1x16xf32> to vector<4x16xf32>
    %c0_31 = arith.constant 0 : index
    %c48 = arith.constant 48 : index
    %56 = vector.load %arg4[%c0_31, %c48] : memref<4x128xf32, #tpu.memory_space<vmem>>, vector<4x16xf32>
    tpu.vector_store %arg4[%c0_31, %c48], %55 {strides = array<i32>} : memref<4x128xf32, #tpu.memory_space<vmem>>, vector<4x16xf32>,
    %57 = vector.extract_strided_slice %26 {offsets = [0, 3, 0], sizes = [4, 1, 8], strides = [1, 1, 1]} : vector<4x8x8xf32> to vector<4x1x8xf32>
    %58 = vector.shape_cast %57 : vector<4x1x8xf32> to vector<4x8xf32>
    %c0_32 = arith.constant 0 : index
    %c24 = arith.constant 24 : index
    %59 = vector.load %arg5[%c0_32, %c24] : memref<4x64xf32, #tpu.memory_space<vmem>>, vector<4x8xf32>
    tpu.vector_store %arg5[%c0_32, %c24], %58 {strides = array<i32>} : memref<4x64xf32, #tpu.memory_space<vmem>>, vector<4x8xf32>,
    %60 = vector.extract_strided_slice %35 {offsets = [0, 4, 0], sizes = [4, 1, 16], strides = [1, 1, 1]} : vector<4x8x16xf32> to vector<4x1x16xf32>
    %61 = vector.shape_cast %60 : vector<4x1x16xf32> to vector<4x16xf32>
    %c0_33 = arith.constant 0 : index
    %c64 = arith.constant 64 : index
    %62 = vector.load %arg4[%c0_33, %c64] : memref<4x128xf32, #tpu.memory_space<vmem>>, vector<4x16xf32>
    tpu.vector_store %arg4[%c0_33, %c64], %61 {strides = array<i32>} : memref<4x128xf32, #tpu.memory_space<vmem>>, vector<4x16xf32>,
    %63 = vector.extract_strided_slice %26 {offsets = [0, 4, 0], sizes = [4, 1, 8], strides = [1, 1, 1]} : vector<4x8x8xf32> to vector<4x1x8xf32>
    %64 = vector.shape_cast %63 : vector<4x1x8xf32> to vector<4x8xf32>
    %c0_34 = arith.constant 0 : index
    %c32_35 = arith.constant 32 : index
    %65 = vector.load %arg5[%c0_34, %c32_35] : memref<4x64xf32, #tpu.memory_space<vmem>>, vector<4x8xf32>
    tpu.vector_store %arg5[%c0_34, %c32_35], %64 {strides = array<i32>} : memref<4x64xf32, #tpu.memory_space<vmem>>, vector<4x8xf32>,
    %66 = vector.extract_strided_slice %35 {offsets = [0, 5, 0], sizes = [4, 1, 16], strides = [1, 1, 1]} : vector<4x8x16xf32> to vector<4x1x16xf32>
    %67 = vector.shape_cast %66 : vector<4x1x16xf32> to vector<4x16xf32>
    %c0_36 = arith.constant 0 : index
    %c80 = arith.constant 80 : index
    %68 = vector.load %arg4[%c0_36, %c80] : memref<4x128xf32, #tpu.memory_space<vmem>>, vector<4x16xf32>
    tpu.vector_store %arg4[%c0_36, %c80], %67 {strides = array<i32>} : memref<4x128xf32, #tpu.memory_space<vmem>>, vector<4x16xf32>,
    %69 = vector.extract_strided_slice %26 {offsets = [0, 5, 0], sizes = [4, 1, 8], strides = [1, 1, 1]} : vector<4x8x8xf32> to vector<4x1x8xf32>
    %70 = vector.shape_cast %69 : vector<4x1x8xf32> to vector<4x8xf32>
    %c0_37 = arith.constant 0 : index
    %c40 = arith.constant 40 : index
    %71 = vector.load %arg5[%c0_37, %c40] : memref<4x64xf32, #tpu.memory_space<vmem>>, vector<4x8xf32>
    tpu.vector_store %arg5[%c0_37, %c40], %70 {strides = array<i32>} : memref<4x64xf32, #tpu.memory_space<vmem>>, vector<4x8xf32>,
    %72 = vector.extract_strided_slice %35 {offsets = [0, 6, 0], sizes = [4, 1, 16], strides = [1, 1, 1]} : vector<4x8x16xf32> to vector<4x1x16xf32>
    %73 = vector.shape_cast %72 : vector<4x1x16xf32> to vector<4x16xf32>
    %c0_38 = arith.constant 0 : index
    %c96 = arith.constant 96 : index
    %74 = vector.load %arg4[%c0_38, %c96] : memref<4x128xf32, #tpu.memory_space<vmem>>, vector<4x16xf32>
    tpu.vector_store %arg4[%c0_38, %c96], %73 {strides = array<i32>} : memref<4x128xf32, #tpu.memory_space<vmem>>, vector<4x16xf32>,
    %75 = vector.extract_strided_slice %26 {offsets = [0, 6, 0], sizes = [4, 1, 8], strides = [1, 1, 1]} : vector<4x8x8xf32> to vector<4x1x8xf32>
    %76 = vector.shape_cast %75 : vector<4x1x8xf32> to vector<4x8xf32>
    %c0_39 = arith.constant 0 : index
    %c48_40 = arith.constant 48 : index
    %77 = vector.load %arg5[%c0_39, %c48_40] : memref<4x64xf32, #tpu.memory_space<vmem>>, vector<4x8xf32>
    tpu.vector_store %arg5[%c0_39, %c48_40], %76 {strides = array<i32>} : memref<4x64xf32, #tpu.memory_space<vmem>>, vector<4x8xf32>,
    %78 = vector.extract_strided_slice %35 {offsets = [0, 7, 0], sizes = [4, 1, 16], strides = [1, 1, 1]} : vector<4x8x16xf32> to vector<4x1x16xf32>
    %79 = vector.shape_cast %78 : vector<4x1x16xf32> to vector<4x16xf32>
    %c0_41 = arith.constant 0 : index
    %c112 = arith.constant 112 : index
    %80 = vector.load %arg4[%c0_41, %c112] : memref<4x128xf32, #tpu.memory_space<vmem>>, vector<4x16xf32>
    tpu.vector_store %arg4[%c0_41, %c112], %79 {strides = array<i32>} : memref<4x128xf32, #tpu.memory_space<vmem>>, vector<4x16xf32>,
    %81 = vector.extract_strided_slice %26 {offsets = [0, 7, 0], sizes = [4, 1, 8], strides = [1, 1, 1]} : vector<4x8x8xf32> to vector<4x1x8xf32>
    %82 = vector.shape_cast %81 : vector<4x1x8xf32> to vector<4x8xf32>
    %c0_42 = arith.constant 0 : index
    %c56 = arith.constant 56 : index
    %83 = vector.load %arg5[%c0_42, %c56] : memref<4x64xf32, #tpu.memory_space<vmem>>, vector<4x8xf32>
    tpu.vector_store %arg5[%c0_42, %c56], %82 {strides = array<i32>} : memref<4x64xf32, #tpu.memory_space<vmem>>, vector<4x8xf32>,
    return
  }
}

</mosaic_0001>

<llo_original>
// kernel: tpu_custom_call.1
$region0: #{tpu_custom_call.1}
  #allocation0 [shape = 'u32[]', space=smem, size = 0x4, offset = 0x4, fixed_abs, tag = 'smem constant byte address 0x4 - core index']
  #allocation1 [shape = 'u32[72,128]{1,0:T(1,128)}', space=vmem, size = 0x9000, scoped, tag = 'internal scratch']
  %s0 = inlined_call_operand.vmem [shape: f32[4,8,8], index: 0, kind: input, shape index: {}]
  %s1 = inlined_call_operand.hbm [shape: f32[4,8,16], index: 1, kind: input, shape index: {}]
  %s2 = inlined_call_operand.hbm [shape: f32[17,48], index: 2, kind: input, shape index: {}]
  %s3 = inlined_call_operand.vmem [shape: f32[17,16], index: 3, kind: input, shape index: {}]
  %s4 = inlined_call_operand.hbm [shape: f32[4,128], index: 4, kind: output, shape index: {0}]
  %s5 = inlined_call_operand.hbm [shape: f32[4,64], index: 5, kind: output, shape index: {1}]
  %6 = xla_tuple %s4, %s5
  %s7 = sld [smem:[#allocation0]]
  $region42: #{tpu_custom_call.1} parent=0
    _
  %s9 = ssub.s32 1, %s7
  %s10 = scalar_select 0, %s9, %s7
  $region1: #{tpu_custom_call.1} parent=0
    #allocation2 [shape = 'u8[16384]{0}', space=vmem, size = 0x4000, scoped, tag = 'input window, operand 1, single buffered']
    #allocation3 [shape = 's32[1]{0}', space=sflag, size = 0x4, scoped, tag = 'scoped memory for tpu_custom_call.1']
    #allocation4 [shape = 's32[1]{0}', space=sflag, size = 0x4, scoped, tag = 'scoped memory for tpu_custom_call.1']
    #allocation5 [shape = 'u8[12288]{0}', space=vmem, size = 0x3000, scoped, tag = 'input window, operand 2, single buffered']
    #allocation6 [shape = 's32[1]{0}', space=sflag, size = 0x4, scoped, tag = 'scoped memory for tpu_custom_call.1']
    #allocation7 [shape = 'u8[2048]{0}', space=vmem, size = 0x800, scoped, tag = 'output window, operand 0, single buffered']
    #allocation8 [shape = 'u8[2048]{0}', space=vmem, size = 0x800, scoped, tag = 'output window, operand 1, single buffered']
    #allocation9 [shape = 's32[1]{0}', space=sflag, size = 0x4, scoped, tag = 'scoped memory for tpu_custom_call.1']
    %11 = vsyncpa [#allocation3], 0
    %12 = vsyncpa [#allocation6], 0
    %13 = vsyncpa [#allocation4], 0
    %14 = vsyncpa [#allocation9], 0
    // Predicated region
    $region2: #{tpu_custom_call.1} parent=1 // pred_check
      _
    $region3: #{tpu_custom_call.1} parent=1 // pred_check_branch
      %16 = sbr.rel (0) target = $region5
    $region4: #{tpu_custom_call.1} parent=1 // pred_region
      _
    $region5: #{tpu_custom_call.1} parent=1 // pred_fallthru
      _
    // Predicated region
    $region6: #{tpu_custom_call.1} parent=1 // pred_check
      _
    $region7: #{tpu_custom_call.1} parent=1 // pred_check_branch
      %18 = sbr.rel (0) target = $region9
    $region8: #{tpu_custom_call.1} parent=1 // pred_region
      %20 = vsyncadd [#allocation3], 0
      %s21 = sshll.u32 %s1, 4
      %s22 = int_to_ptr.hbm [resolvable:$true] %s21
      %s23 = sshll.u32 [#allocation2], 4
      %s24 = int_to_ptr.vmem [resolvable:$true] %s23
      %29 = dma.hbm_to_vmem [thread:$0]  %s22, 512, %s24, [#allocation3], 128, 128, 8
    $region9: #{tpu_custom_call.1} parent=1 // pred_fallthru
      _
    // Predicated region
    $region10: #{tpu_custom_call.1} parent=1 // pred_check
      _
    $region11: #{tpu_custom_call.1} parent=1 // pred_check_branch
      %31 = sbr.rel (0) target = $region13
    $region12: #{tpu_custom_call.1} parent=1 // pred_region
      %33 = vsyncadd [#allocation6], 0
      %s34 = sshll.u32 %s2, 4
      %s35 = int_to_ptr.hbm [resolvable:$true] %s34
      %s36 = sshll.u32 [#allocation5], 4
      %s37 = int_to_ptr.vmem [resolvable:$true] %s36
      %42 = dma.hbm_to_vmem [thread:$0]  %s35, 384, %s37, [#allocation6], 128, 128, 8
    $region13: #{tpu_custom_call.1} parent=1 // pred_fallthru
      _
    // Predicated region
    $region14: #{tpu_custom_call.1} parent=1 // pred_check
      _
    $region15: #{tpu_custom_call.1} parent=1 // pred_check_branch
      %44 = sbr.rel (0) target = $region17
    $region16: #{tpu_custom_call.1} parent=1 // pred_region
      _
    $region17: #{tpu_custom_call.1} parent=1 // pred_fallthru
      _
    // Predicated region
    $region18: #{tpu_custom_call.1} parent=1 // pred_check
      _
    $region19: #{tpu_custom_call.1} parent=1 // pred_check_branch
      %46 = sbr.rel (0) target = $region21
    $region20: #{tpu_custom_call.1} parent=1 // pred_region
      %48 = dma.done [#allocation3], 512
    $region21: #{tpu_custom_call.1} parent=1 // pred_fallthru
      _
    // Predicated region
    $region22: #{tpu_custom_call.1} parent=1 // pred_check
      _
    $region23: #{tpu_custom_call.1} parent=1 // pred_check_branch
      %50 = sbr.rel (0) target = $region25
    $region24: #{tpu_custom_call.1} parent=1 // pred_region
      %52 = dma.done [#allocation6], 384
    $region25: #{tpu_custom_call.1} parent=1 // pred_fallthru
      _
    %v53 = vld [vmem:[%s0] sm:$0xff]
    %v54 = vld [vmem:[%s0 + $0x8] sm:$0xff]
    %v55 = vld [vmem:[%s0 + $0x10] sm:$0xff]
    %v56 = vld [vmem:[%s0 + $0x18] sm:$0xff]
    %v57 = vld [vmem:[#allocation2] sm:$0xff]
    %v58 = vld [vmem:[#allocation2 + $0x8] sm:$0xff]
    %v59 = vld [vmem:[#allocation2 + $0x10] sm:$0xff]
    %v60 = vld [vmem:[#allocation2 + $0x18] sm:$0xff]
    %vm61 = vcmask 64512
    %v63 = vsel %vm61, %v53, 0
    %65 = vmatpush.msra.mxu0 0.0
    %66 = vmatpush.msra.mxu0 0.0
    %67 = vmatpush.msra.mxu0 0.0
    %68 = vmatpush.msra.mxu0 0.0
    %69 = vmatpush.msra.mxu0 0.0
    %70 = vmatpush.msra.mxu0 0.0
    %71 = vmatpush.msra.mxu0 0.0
    %72 = vmatpush.msra.mxu0 0.0
    %73 = vmatpush.msra.mxu0 0.0
    %74 = vmatpush.msra.mxu0 0.0
    %75 = vmatpush.msra.mxu0 0.0
    %76 = vmatpush.msra.mxu0 0.0
    %77 = vmatpush.msra.mxu0 0.0
    %78 = vmatpush.msra.mxu0 0.0
    %79 = vmatpush.msra.mxu0 0.0
    %80 = vmatpush.msra.mxu0 %v57
    %81 = vmatmul.f32.gmra.mxu0 %v63
    %v82 = vpop.f32.mrf.mxu0
    %v83 = vadd.f32 0.0, %v82
    %84 = vdwg.mxu0
    %v86 = vsel %vm61, %v54, 0
    %88 = vmatpush.msra.mxu0 0.0
    %89 = vmatpush.msra.mxu0 0.0
    %90 = vmatpush.msra.mxu0 0.0
    %91 = vmatpush.msra.mxu0 0.0
    %92 = vmatpush.msra.mxu0 0.0
    %93 = vmatpush.msra.mxu0 0.0
    %94 = vmatpush.msra.mxu0 0.0
    %95 = vmatpush.msra.mxu0 0.0
    %96 = vmatpush.msra.mxu0 0.0
    %97 = vmatpush.msra.mxu0 0.0
    %98 = vmatpush.msra.mxu0 0.0
    %99 = vmatpush.msra.mxu0 0.0
    %100 = vmatpush.msra.mxu0 0.0
    %101 = vmatpush.msra.mxu0 0.0
    %102 = vmatpush.msra.mxu0 0.0
    %103 = vmatpush.msra.mxu0 %v58
    %104 = vmatmul.f32.gmra.mxu0 %v86
    %v105 = vpop.f32.mrf.mxu0
    %v106 = vadd.f32 0.0, %v105
    %107 = vdwg.mxu0
    %v109 = vsel %vm61, %v55, 0
    %111 = vmatpush.msra.mxu0 0.0
    %112 = vmatpush.msra.mxu0 0.0
    %113 = vmatpush.msra.mxu0 0.0
    %114 = vmatpush.msra.mxu0 0.0
    %115 = vmatpush.msra.mxu0 0.0
    %116 = vmatpush.msra.mxu0 0.0
    %117 = vmatpush.msra.mxu0 0.0
    %118 = vmatpush.msra.mxu0 0.0
    %119 = vmatpush.msra.mxu0 0.0
    %120 = vmatpush.msra.mxu0 0.0
    %121 = vmatpush.msra.mxu0 0.0
    %122 = vmatpush.msra.mxu0 0.0
    %123 = vmatpush.msra.mxu0 0.0
    %124 = vmatpush.msra.mxu0 0.0
    %125 = vmatpush.msra.mxu0 0.0
    %126 = vmatpush.msra.mxu0 %v59
    %127 = vmatmul.f32.gmra.mxu0 %v109
    %v128 = vpop.f32.mrf.mxu0
    %v129 = vadd.f32 0.0, %v128
    %130 = vdwg.mxu0
    %v132 = vsel %vm61, %v56, 0
    %134 = vmatpush.msra.mxu0 0.0
    %135 = vmatpush.msra.mxu0 0.0
    %136 = vmatpush.msra.mxu0 0.0
    %137 = vmatpush.msra.mxu0 0.0
    %138 = vmatpush.msra.mxu0 0.0
    %139 = vmatpush.msra.mxu0 0.0
    %140 = vmatpush.msra.mxu0 0.0
    %141 = vmatpush.msra.mxu0 0.0
    %142 = vmatpush.msra.mxu0 0.0
    %143 = vmatpush.msra.mxu0 0.0
    %144 = vmatpush.msra.mxu0 0.0
    %145 = vmatpush.msra.mxu0 0.0
    %146 = vmatpush.msra.mxu0 0.0
    %147 = vmatpush.msra.mxu0 0.0
    %148 = vmatpush.msra.mxu0 0.0
    %149 = vmatpush.msra.mxu0 %v60
    %150 = vmatmul.f32.gmra.mxu0 %v132
    %v151 = vpop.f32.mrf.mxu0
    %v152 = vadd.f32 0.0, %v151
    %153 = vdwg.mxu0
    %v154 = vld [vmem:[#allocation5] sm:$0xff]
    %v155 = vld [vmem:[#allocation5 + $0x8] sm:$0xff]
    %v156 = vld [vmem:[#allocation5 + $0x10] sm:$0x1]
    %v157 = vperm.slane %v156, 0
    %vm158 = vcmask 130048
    %v160 = vsel %vm158, %v83, 0
    %v163 = vsel %vm158, %v106, 0
    %v166 = vsel %vm158, %v129, 0
    %v169 = vsel %vm158, %v152, 0
    %171 = vmatpush.msra.mxu0 0.0
    %172 = vmatpush.msra.mxu0 0.0
    %173 = vmatpush.msra.mxu0 0.0
    %174 = vmatpush.msra.mxu0 0.0
    %175 = vmatpush.msra.mxu0 0.0
    %176 = vmatpush.msra.mxu0 0.0
    %177 = vmatpush.msra.mxu0 0.0
    %178 = vmatpush.msra.mxu0 0.0
    %179 = vmatpush.msra.mxu0 0.0
    %180 = vmatpush.msra.mxu0 0.0
    %181 = vmatpush.msra.mxu0 0.0
    %182 = vmatpush.msra.mxu0 0.0
    %183 = vmatpush.msra.mxu0 0.0
    %184 = vmatpush.msra.mxu0 0.0
    %185 = vmatpush.msra.mxu0 %v155
    %186 = vmatpush.msra.mxu0 %v154
    %187 = vmatmul.f32.gmra.mxu0 %v160
    %v188 = vpop.f32.mrf.mxu0
    %v189 = vadd.f32 %v157, %v188
    %190 = vmatmul.f32.gmra.mxu0 %v163
    %v191 = vpop.f32.mrf.mxu0
    %v192 = vadd.f32 %v157, %v191
    %193 = vmatmul.f32.gmra.mxu0 %v166
    %v194 = vpop.f32.mrf.mxu0
    %v195 = vadd.f32 %v157, %v194
    %196 = vmatmul.f32.gmra.mxu0 %v169
    %v197 = vpop.f32.mrf.mxu0
    %v198 = vadd.f32 %v157, %v197
    %199 = vdwg.mxu0
    %201 = vrot.lane.b32.xlu0 %v189, 112
    %v202 = vpop.permute.xlu0 %201
    %v203 = vsel %vm158, %v189, 0
    %v205 = vsel %vm158, %v202, 0
    %207 = vmatpush.xpose.msra.mxu0 0.0
    %208 = vmatpush.xpose.msra.mxu0 0.0
    %209 = vmatpush.xpose.msra.mxu0 0.0
    %210 = vmatpush.xpose.msra.mxu0 0.0
    %211 = vmatpush.xpose.msra.mxu0 0.0
    %212 = vmatpush.xpose.msra.mxu0 0.0
    %213 = vmatpush.xpose.msra.mxu0 0.0
    %214 = vmatpush.xpose.msra.mxu0 0.0
    %215 = vmatpush.xpose.msra.mxu0 0.0
    %216 = vmatpush.xpose.msra.mxu0 0.0
    %217 = vmatpush.xpose.msra.mxu0 0.0
    %218 = vmatpush.xpose.msra.mxu0 0.0
    %219 = vmatpush.xpose.msra.mxu0 0.0
    %220 = vmatpush.xpose.msra.mxu0 0.0
    %221 = vmatpush.xpose.msra.mxu0 0.0
    %222 = vmatpush.xpose.msra.mxu0 %v205
    %223 = vmatmul.f32.gmra.mxu0 %v203
    %v224 = vpop.f32.mrf.mxu0
    %v225 = vadd.f32 0.0, %v224
    %226 = vdwg.mxu0
    %228 = vrot.lane.b32.xlu0 %v192, 112
    %v229 = vpop.permute.xlu0 %228
    %v230 = vsel %vm158, %v192, 0
    %v232 = vsel %vm158, %v229, 0
    %234 = vmatpush.xpose.msra.mxu0 0.0
    %235 = vmatpush.xpose.msra.mxu0 0.0
    %236 = vmatpush.xpose.msra.mxu0 0.0
    %237 = vmatpush.xpose.msra.mxu0 0.0
    %238 = vmatpush.xpose.msra.mxu0 0.0
    %239 = vmatpush.xpose.msra.mxu0 0.0
    %240 = vmatpush.xpose.msra.mxu0 0.0
    %241 = vmatpush.xpose.msra.mxu0 0.0
    %242 = vmatpush.xpose.msra.mxu0 0.0
    %243 = vmatpush.xpose.msra.mxu0 0.0
    %244 = vmatpush.xpose.msra.mxu0 0.0
    %245 = vmatpush.xpose.msra.mxu0 0.0
    %246 = vmatpush.xpose.msra.mxu0 0.0
    %247 = vmatpush.xpose.msra.mxu0 0.0
    %248 = vmatpush.xpose.msra.mxu0 0.0
    %249 = vmatpush.xpose.msra.mxu0 %v232
    %250 = vmatmul.f32.gmra.mxu0 %v230
    %v251 = vpop.f32.mrf.mxu0
    %v252 = vadd.f32 0.0, %v251
    %253 = vdwg.mxu0
    %255 = vrot.lane.b32.xlu0 %v195, 112
    %v256 = vpop.permute.xlu0 %255
    %v257 = vsel %vm158, %v195, 0
    %v259 = vsel %vm158, %v256, 0
    %261 = vmatpush.xpose.msra.mxu0 0.0
    %262 = vmatpush.xpose.msra.mxu0 0.0
    %263 = vmatpush.xpose.msra.mxu0 0.0
    %264 = vmatpush.xpose.msra.mxu0 0.0
    %265 = vmatpush.xpose.msra.mxu0 0.0
    %266 = vmatpush.xpose.msra.mxu0 0.0
    %267 = vmatpush.xpose.msra.mxu0 0.0
    %268 = vmatpush.xpose.msra.mxu0 0.0
    %269 = vmatpush.xpose.msra.mxu0 0.0
    %270 = vmatpush.xpose.msra.mxu0 0.0
    %271 = vmatpush.xpose.msra.mxu0 0.0
    %272 = vmatpush.xpose.msra.mxu0 0.0
    %273 = vmatpush.xpose.msra.mxu0 0.0
    %274 = vmatpush.xpose.msra.mxu0 0.0
    %275 = vmatpush.xpose.msra.mxu0 0.0
    %276 = vmatpush.xpose.msra.mxu0 %v259
    %277 = vmatmul.f32.gmra.mxu0 %v257
    %v278 = vpop.f32.mrf.mxu0
    %v279 = vadd.f32 0.0, %v278
    %280 = vdwg.mxu0
    %282 = vrot.lane.b32.xlu0 %v198, 112
    %v283 = vpop.permute.xlu0 %282
    %v284 = vsel %vm158, %v198, 0
    %v286 = vsel %vm158, %v283, 0
    %288 = vmatpush.xpose.msra.mxu0 0.0
    %289 = vmatpush.xpose.msra.mxu0 0.0
    %290 = vmatpush.xpose.msra.mxu0 0.0
    %291 = vmatpush.xpose.msra.mxu0 0.0
    %292 = vmatpush.xpose.msra.mxu0 0.0
    %293 = vmatpush.xpose.msra.mxu0 0.0
    %294 = vmatpush.xpose.msra.mxu0 0.0
    %295 = vmatpush.xpose.msra.mxu0 0.0
    %296 = vmatpush.xpose.msra.mxu0 0.0
    %297 = vmatpush.xpose.msra.mxu0 0.0
    %298 = vmatpush.xpose.msra.mxu0 0.0
    %299 = vmatpush.xpose.msra.mxu0 0.0
    %300 = vmatpush.xpose.msra.mxu0 0.0
    %301 = vmatpush.xpose.msra.mxu0 0.0
    %302 = vmatpush.xpose.msra.mxu0 0.0
    %303 = vmatpush.xpose.msra.mxu0 %v286
    %304 = vmatmul.f32.gmra.mxu0 %v284
    %v305 = vpop.f32.mrf.mxu0
    %v306 = vadd.f32 0.0, %v305
    %307 = vdwg.mxu0
    %v308 = vmul.f32 %v225, 0.25
    %v309 = vmul.f32 %v252, 0.25
    %v310 = vmul.f32 %v279, 0.25
    %v311 = vmul.f32 %v306, 0.25
    %v312 = vsel %vm61, %v308, -inf
    %313 = vmax.xlane.f32.xlu0 %v312
    %v314 = vpop.xlane.xlu0 %313
    %v315 = vsel %vm61, %v309, -inf
    %316 = vmax.xlane.f32.xlu0 %v315
    %v317 = vpop.xlane.xlu0 %316
    %v318 = vsel %vm61, %v310, -inf
    %319 = vmax.xlane.f32.xlu0 %v318
    %v320 = vpop.xlane.xlu0 %319
    %v321 = vsel %vm61, %v311, -inf
    %322 = vmax.xlane.f32.xlu0 %v321
    %v323 = vpop.xlane.xlu0 %322
    %v324 = vsub.f32 %v308, %v314
    %v325 = vsub.f32 %v309, %v317
    %v326 = vsub.f32 %v310, %v320
    %v327 = vsub.f32 %v311, %v323
    %v328 = vmul.f32 %v324, 1.442695
    %v329 = vpow.pop %v328
    %v330 = vmul.f32 %v325, 1.442695
    %v331 = vpow.pop %v330
    %v332 = vmul.f32 %v326, 1.442695
    %v333 = vpow.pop %v332
    %v334 = vmul.f32 %v327, 1.442695
    %v335 = vpow.pop %v334
    %v336 = vsel %vm61, %v329, 0.0
    %337 = vadd.xlane.f32.xlu0 %v336
    %v338 = vpop.xlane.xlu0 %337
    %v339 = vsel %vm61, %v331, 0.0
    %340 = vadd.xlane.f32.xlu0 %v339
    %v341 = vpop.xlane.xlu0 %340
    %v342 = vsel %vm61, %v333, 0.0
    %343 = vadd.xlane.f32.xlu0 %v342
    %v344 = vpop.xlane.xlu0 %343
    %v345 = vsel %vm61, %v335, 0.0
    %346 = vadd.xlane.f32.xlu0 %v345
    %v347 = vpop.xlane.xlu0 %346
    %v348 = vrcp.pop %v338
    %v349 = vmul.f32 %v338, %v348
    %v350 = vsub.f32 1.0, %v349
    %v351 = vmul.f32 %v348, %v350
    %v352 = vadd.f32 %v348, %v351
    %vm353 = vweird.f32 %v338
    %vm354 = vweird.f32 %v348
    %vm355 = vmor %vm353, %vm354
    %v356 = vsel %vm355, %v348, %v352
    %v357 = vand.u32 2147483647, %v338
    %vm358 = vcmp.eq.f32.partialorder %v357, 8.507059e+37
    %v359 = vand.u32 %v338, 2147483648
    %v360 = vor.u32 1.1754944e-38, %v359
    %v361 = vsel %vm358, %v360, %v356
    %v362 = vmul.f32 %v329, %v361
    %v363 = vrcp.pop %v341
    %v364 = vmul.f32 %v341, %v363
    %v365 = vsub.f32 1.0, %v364
    %v366 = vmul.f32 %v363, %v365
    %v367 = vadd.f32 %v363, %v366
    %vm368 = vweird.f32 %v341
    %vm369 = vweird.f32 %v363
    %vm370 = vmor %vm368, %vm369
    %v371 = vsel %vm370, %v363, %v367
    %v372 = vand.u32 2147483647, %v341
    %vm373 = vcmp.eq.f32.partialorder %v372, 8.507059e+37
    %v374 = vand.u32 %v341, 2147483648
    %v375 = vor.u32 1.1754944e-38, %v374
    %v376 = vsel %vm373, %v375, %v371
    %v377 = vmul.f32 %v331, %v376
    %v378 = vrcp.pop %v344
    %v379 = vmul.f32 %v344, %v378
    %v380 = vsub.f32 1.0, %v379
    %v381 = vmul.f32 %v378, %v380
    %v382 = vadd.f32 %v378, %v381
    %vm383 = vweird.f32 %v344
    %vm384 = vweird.f32 %v378
    %vm385 = vmor %vm383, %vm384
    %v386 = vsel %vm385, %v378, %v382
    %v387 = vand.u32 2147483647, %v344
    %vm388 = vcmp.eq.f32.partialorder %v387, 8.507059e+37
    %v389 = vand.u32 %v344, 2147483648
    %v390 = vor.u32 1.1754944e-38, %v389
    %v391 = vsel %vm388, %v390, %v386
    %v392 = vmul.f32 %v333, %v391
    %v393 = vrcp.pop %v347
    %v394 = vmul.f32 %v347, %v393
    %v395 = vsub.f32 1.0, %v394
    %v396 = vmul.f32 %v393, %v395
    %v397 = vadd.f32 %v393, %v396
    %vm398 = vweird.f32 %v347
    %vm399 = vweird.f32 %v393
    %vm400 = vmor %vm398, %vm399
    %v401 = vsel %vm400, %v393, %v397
    %v402 = vand.u32 2147483647, %v347
    %vm403 = vcmp.eq.f32.partialorder %v402, 8.507059e+37
    %v404 = vand.u32 %v347, 2147483648
    %v405 = vor.u32 1.1754944e-38, %v404
    %v406 = vsel %vm403, %v405, %v401
    %v407 = vmul.f32 %v335, %v406
    %408 = vrot.lane.b32.xlu0 %v189, 96
    %v409 = vpop.permute.xlu0 %408
    %v412 = vsel %vm61, %v362, 0
    %414 = vmatpush.msra.mxu0 0.0
    %415 = vmatpush.msra.mxu0 0.0
    %416 = vmatpush.msra.mxu0 0.0
    %417 = vmatpush.msra.mxu0 0.0
    %418 = vmatpush.msra.mxu0 0.0
    %419 = vmatpush.msra.mxu0 0.0
    %420 = vmatpush.msra.mxu0 0.0
    %421 = vmatpush.msra.mxu0 0.0
    %422 = vmatpush.msra.mxu0 0.0
    %423 = vmatpush.msra.mxu0 0.0
    %424 = vmatpush.msra.mxu0 0.0
    %425 = vmatpush.msra.mxu0 0.0
    %426 = vmatpush.msra.mxu0 0.0
    %427 = vmatpush.msra.mxu0 0.0
    %428 = vmatpush.msra.mxu0 0.0
    %429 = vmatpush.msra.mxu0 %v409
    %430 = vmatmul.f32.gmra.mxu0 %v412
    %v431 = vpop.f32.mrf.mxu0
    %v432 = vadd.f32 0.0, %v431
    %433 = vdwg.mxu0
    %434 = vrot.lane.b32.xlu0 %v192, 96
    %v435 = vpop.permute.xlu0 %434
    %v438 = vsel %vm61, %v377, 0
    %440 = vmatpush.msra.mxu0 0.0
    %441 = vmatpush.msra.mxu0 0.0
    %442 = vmatpush.msra.mxu0 0.0
    %443 = vmatpush.msra.mxu0 0.0
    %444 = vmatpush.msra.mxu0 0.0
    %445 = vmatpush.msra.mxu0 0.0
    %446 = vmatpush.msra.mxu0 0.0
    %447 = vmatpush.msra.mxu0 0.0
    %448 = vmatpush.msra.mxu0 0.0
    %449 = vmatpush.msra.mxu0 0.0
    %450 = vmatpush.msra.mxu0 0.0
    %451 = vmatpush.msra.mxu0 0.0
    %452 = vmatpush.msra.mxu0 0.0
    %453 = vmatpush.msra.mxu0 0.0
    %454 = vmatpush.msra.mxu0 0.0
    %455 = vmatpush.msra.mxu0 %v435
    %456 = vmatmul.f32.gmra.mxu0 %v438
    %v457 = vpop.f32.mrf.mxu0
    %v458 = vadd.f32 0.0, %v457
    %459 = vdwg.mxu0
    %460 = vrot.lane.b32.xlu0 %v195, 96
    %v461 = vpop.permute.xlu0 %460
    %v464 = vsel %vm61, %v392, 0
    %466 = vmatpush.msra.mxu0 0.0
    %467 = vmatpush.msra.mxu0 0.0
    %468 = vmatpush.msra.mxu0 0.0
    %469 = vmatpush.msra.mxu0 0.0
    %470 = vmatpush.msra.mxu0 0.0
    %471 = vmatpush.msra.mxu0 0.0
    %472 = vmatpush.msra.mxu0 0.0
    %473 = vmatpush.msra.mxu0 0.0
    %474 = vmatpush.msra.mxu0 0.0
    %475 = vmatpush.msra.mxu0 0.0
    %476 = vmatpush.msra.mxu0 0.0
    %477 = vmatpush.msra.mxu0 0.0
    %478 = vmatpush.msra.mxu0 0.0
    %479 = vmatpush.msra.mxu0 0.0
    %480 = vmatpush.msra.mxu0 0.0
    %481 = vmatpush.msra.mxu0 %v461
    %482 = vmatmul.f32.gmra.mxu0 %v464
    %v483 = vpop.f32.mrf.mxu0
    %v484 = vadd.f32 0.0, %v483
    %485 = vdwg.mxu0
    %486 = vrot.lane.b32.xlu0 %v198, 96
    %v487 = vpop.permute.xlu0 %486
    %v490 = vsel %vm61, %v407, 0
    %492 = vmatpush.msra.mxu0 0.0
    %493 = vmatpush.msra.mxu0 0.0
    %494 = vmatpush.msra.mxu0 0.0
    %495 = vmatpush.msra.mxu0 0.0
    %496 = vmatpush.msra.mxu0 0.0
    %497 = vmatpush.msra.mxu0 0.0
    %498 = vmatpush.msra.mxu0 0.0
    %499 = vmatpush.msra.mxu0 0.0
    %500 = vmatpush.msra.mxu0 0.0
    %501 = vmatpush.msra.mxu0 0.0
    %502 = vmatpush.msra.mxu0 0.0
    %503 = vmatpush.msra.mxu0 0.0
    %504 = vmatpush.msra.mxu0 0.0
    %505 = vmatpush.msra.mxu0 0.0
    %506 = vmatpush.msra.mxu0 0.0
    %507 = vmatpush.msra.mxu0 %v487
    %508 = vmatmul.f32.gmra.mxu0 %v490
    %v509 = vpop.f32.mrf.mxu0
    %v510 = vadd.f32 0.0, %v509
    %511 = vdwg.mxu0
    %512 = vmatpush.msra.mxu0 0.0
    %513 = vmatpush.msra.mxu0 0.0
    %514 = vmatpush.msra.mxu0 0.0
    %515 = vmatpush.msra.mxu0 0.0
    %516 = vmatpush.msra.mxu0 0.0
    %517 = vmatpush.msra.mxu0 0.0
    %518 = vmatpush.msra.mxu0 0.0
    %519 = vmatpush.msra.mxu0 0.0
    %520 = vmatpush.msra.mxu0 0.0
    %521 = vmatpush.msra.mxu0 0.0
    %522 = vmatpush.msra.mxu0 0.0
    %523 = vmatpush.msra.mxu0 0.0
    %524 = vmatpush.msra.mxu0 0.0
    %525 = vmatpush.msra.mxu0 0.0
    %526 = vmatpush.msra.mxu0 0.0
    %527 = vmatpush.msra.mxu0 %v432
    %528 = vmatmul.f32.gmra.mxu0 %v63
    %v529 = vpop.f32.mrf.mxu0
    %v530 = vadd.f32 0.0, %v529
    %531 = vdwg.mxu0
    %532 = vmatpush.msra.mxu0 0.0
    %533 = vmatpush.msra.mxu0 0.0
    %534 = vmatpush.msra.mxu0 0.0
    %535 = vmatpush.msra.mxu0 0.0
    %536 = vmatpush.msra.mxu0 0.0
    %537 = vmatpush.msra.mxu0 0.0
    %538 = vmatpush.msra.mxu0 0.0
    %539 = vmatpush.msra.mxu0 0.0
    %540 = vmatpush.msra.mxu0 0.0
    %541 = vmatpush.msra.mxu0 0.0
    %542 = vmatpush.msra.mxu0 0.0
    %543 = vmatpush.msra.mxu0 0.0
    %544 = vmatpush.msra.mxu0 0.0
    %545 = vmatpush.msra.mxu0 0.0
    %546 = vmatpush.msra.mxu0 0.0
    %547 = vmatpush.msra.mxu0 %v458
    %548 = vmatmul.f32.gmra.mxu0 %v86
    %v549 = vpop.f32.mrf.mxu0
    %v550 = vadd.f32 0.0, %v549
    %551 = vdwg.mxu0
    %552 = vmatpush.msra.mxu0 0.0
    %553 = vmatpush.msra.mxu0 0.0
    %554 = vmatpush.msra.mxu0 0.0
    %555 = vmatpush.msra.mxu0 0.0
    %556 = vmatpush.msra.mxu0 0.0
    %557 = vmatpush.msra.mxu0 0.0
    %558 = vmatpush.msra.mxu0 0.0
    %559 = vmatpush.msra.mxu0 0.0
    %560 = vmatpush.msra.mxu0 0.0
    %561 = vmatpush.msra.mxu0 0.0
    %562 = vmatpush.msra.mxu0 0.0
    %563 = vmatpush.msra.mxu0 0.0
    %564 = vmatpush.msra.mxu0 0.0
    %565 = vmatpush.msra.mxu0 0.0
    %566 = vmatpush.msra.mxu0 0.0
    %567 = vmatpush.msra.mxu0 %v484
    %568 = vmatmul.f32.gmra.mxu0 %v109
    %v569 = vpop.f32.mrf.mxu0
    %v570 = vadd.f32 0.0, %v569
    %571 = vdwg.mxu0
    %572 = vmatpush.msra.mxu0 0.0
    %573 = vmatpush.msra.mxu0 0.0
    %574 = vmatpush.msra.mxu0 0.0
    %575 = vmatpush.msra.mxu0 0.0
    %576 = vmatpush.msra.mxu0 0.0
    %577 = vmatpush.msra.mxu0 0.0
    %578 = vmatpush.msra.mxu0 0.0
    %579 = vmatpush.msra.mxu0 0.0
    %580 = vmatpush.msra.mxu0 0.0
    %581 = vmatpush.msra.mxu0 0.0
    %582 = vmatpush.msra.mxu0 0.0
    %583 = vmatpush.msra.mxu0 0.0
    %584 = vmatpush.msra.mxu0 0.0
    %585 = vmatpush.msra.mxu0 0.0
    %586 = vmatpush.msra.mxu0 0.0
    %587 = vmatpush.msra.mxu0 %v510
    %588 = vmatmul.f32.gmra.mxu0 %v132
    %v589 = vpop.f32.mrf.mxu0
    %v590 = vadd.f32 0.0, %v589
    %591 = vdwg.mxu0
    %v592 = vld [vmem:[%s3] sm:$0xff]
    %v593 = vld [vmem:[%s3 + $0x8] sm:$0xff]
    %v594 = vld [vmem:[%s3 + $0x10] sm:$0x1]
    %v595 = vperm.slane %v594, 0
    %v597 = vsel %vm158, %v530, 0
    %v600 = vsel %vm158, %v550, 0
    %v603 = vsel %vm158, %v570, 0
    %v606 = vsel %vm158, %v590, 0
    %608 = vmatpush.msra.mxu0 0.0
    %609 = vmatpush.msra.mxu0 0.0
    %610 = vmatpush.msra.mxu0 0.0
    %611 = vmatpush.msra.mxu0 0.0
    %612 = vmatpush.msra.mxu0 0.0
    %613 = vmatpush.msra.mxu0 0.0
    %614 = vmatpush.msra.mxu0 0.0
    %615 = vmatpush.msra.mxu0 0.0
    %616 = vmatpush.msra.mxu0 0.0
    %617 = vmatpush.msra.mxu0 0.0
    %618 = vmatpush.msra.mxu0 0.0
    %619 = vmatpush.msra.mxu0 0.0
    %620 = vmatpush.msra.mxu0 0.0
    %621 = vmatpush.msra.mxu0 0.0
    %622 = vmatpush.msra.mxu0 %v593
    %623 = vmatpush.msra.mxu0 %v592
    %624 = vmatmul.f32.gmra.mxu0 %v597
    %v625 = vpop.f32.mrf.mxu0
    %v626 = vadd.f32 %v595, %v625
    %627 = vmatmul.f32.gmra.mxu0 %v600
    %v628 = vpop.f32.mrf.mxu0
    %v629 = vadd.f32 %v595, %v628
    %630 = vmatmul.f32.gmra.mxu0 %v603
    %v631 = vpop.f32.mrf.mxu0
    %v632 = vadd.f32 %v595, %v631
    %633 = vmatmul.f32.gmra.mxu0 %v606
    %v634 = vpop.f32.mrf.mxu0
    %v635 = vadd.f32 %v595, %v634
    %636 = vdwg.mxu0
    %v641 = vrot.slane %v629, 7
    %vm642 = vcmask 1041409
    %v643 = vsel %vm642, %v641, %v626
    %v644 = vrot.slane %v632, 6
    %vm645 = vcmask 1042434
    %v646 = vsel %vm645, %v644, %v643
    %v647 = vrot.slane %v635, 5
    %vm648 = vcmask 1043459
    %v649 = vsel %vm648, %v647, %v646
    %vm651 = vcmask 125952
    %652 = vst.msk [vmem:[#allocation7] sm:$0xf] %vm651, %v649
    %v653 = vrot.slane %v377, 7
    %v654 = vsel %vm642, %v653, %v362
    %v655 = vrot.slane %v392, 6
    %v656 = vsel %vm645, %v655, %v654
    %v657 = vrot.slane %v407, 5
    %v658 = vsel %vm648, %v657, %v656
    %vm660 = vcmask 60416
    %661 = vst.msk [vmem:[#allocation8] sm:$0xf] %vm660, %v658
    %v662 = vsel %vm645, %v641, %v626
    %v663 = vsel %vm648, %v644, %v662
    %vm664 = vcmask 1044484
    %v665 = vsel %vm664, %v647, %v663
    %666 = vrot.lane.b32.xlu0 %v665, 16
    %v667 = vpop.permute.xlu0 %666
    %vm669 = vcmask 258177
    %670 = vst.msk [vmem:[#allocation7 - $0x1] sm:$0x1e] %vm669, %v667
    %v671 = vsel %vm645, %v653, %v362
    %v672 = vsel %vm648, %v655, %v671
    %v673 = vsel %vm664, %v657, %v672
    %674 = vrot.lane.b32.xlu0 %v673, 8
    %v675 = vpop.permute.xlu0 %674
    %vm677 = vcmask 127041
    %678 = vst.msk [vmem:[#allocation8 - $0x1] sm:$0x1e] %vm677, %v675
    %v679 = vsel %vm648, %v641, %v626
    %v680 = vsel %vm664, %v644, %v679
    %vm681 = vcmask 1045509
    %v682 = vsel %vm681, %v647, %v680
    %683 = vrot.lane.b32.xlu0 %v682, 32
    %v684 = vpop.permute.xlu0 %683
    %vm686 = vcmask 390402
    %687 = vst.msk [vmem:[#allocation7 - $0x2] sm:$0x3c] %vm686, %v684
    %v688 = vsel %vm648, %v653, %v362
    %v689 = vsel %vm664, %v655, %v688
    %v690 = vsel %vm681, %v657, %v689
    %691 = vrot.lane.b32.xlu0 %v690, 16
    %v692 = vpop.permute.xlu0 %691
    %vm694 = vcmask 193666
    %695 = vst.msk [vmem:[#allocation8 - $0x2] sm:$0x3c] %vm694, %v692
    %v696 = vsel %vm664, %v641, %v626
    %v697 = vsel %vm681, %v644, %v696
    %vm698 = vcmask 1046534
    %v699 = vsel %vm698, %v647, %v697
    %700 = vrot.lane.b32.xlu0 %v699, 48
    %v701 = vpop.permute.xlu0 %700
    %vm703 = vcmask 522627
    %704 = vst.msk [vmem:[#allocation7 - $0x3] sm:$0x78] %vm703, %v701
    %v705 = vsel %vm664, %v653, %v362
    %v706 = vsel %vm681, %v655, %v705
    %v707 = vsel %vm698, %v657, %v706
    %708 = vrot.lane.b32.xlu0 %v707, 24
    %v709 = vpop.permute.xlu0 %708
    %vm711 = vcmask 260291
    %712 = vst.msk [vmem:[#allocation8 - $0x3] sm:$0x78] %vm711, %v709
    %v713 = vsel %vm681, %v641, %v626
    %v714 = vsel %vm698, %v644, %v713
    %vm715 = vcmask 1047559
    %v716 = vsel %vm715, %v647, %v714
    %717 = vrot.lane.b32.xlu0 %v716, 64
    %v718 = vpop.permute.xlu0 %717
    %vm720 = vcmask 654852
    %721 = vst.msk [vmem:[#allocation7 - $0x4] sm:$0xf0] %vm720, %v718
    %v722 = vsel %vm681, %v653, %v362
    %v723 = vsel %vm698, %v655, %v722
    %v724 = vsel %vm715, %v657, %v723
    %725 = vrot.lane.b32.xlu0 %v724, 32
    %v726 = vpop.permute.xlu0 %725
    %vm728 = vcmask 326916
    %729 = vst.msk [vmem:[#allocation8 - $0x4] sm:$0xf0] %vm728, %v726
    %v730 = vsel %vm698, %v641, %v626
    %v731 = vsel %vm715, %v644, %v730
    %732 = vrot.lane.b32.xlu0 %v731, 80
    %v733 = vpop.permute.xlu0 %732
    %734 = vrot.lane.b32.xlu0 %v647, 80
    %v735 = vpop.permute.xlu0 %734
    %vm738 = vcmask 786053
    %739 = vst.msk [vmem:[#allocation7 - $0x5] sm:$0xe0] %vm738, %v733
    %vm740 = vcmask 778880
    %741 = vst.msk [vmem:[#allocation7 + $0x3] sm:$0x1] %vm740, %v735
    %v742 = vsel %vm698, %v653, %v362
    %v743 = vsel %vm715, %v655, %v742
    %744 = vrot.lane.b32.xlu0 %v743, 40
    %v745 = vpop.permute.xlu0 %744
    %746 = vrot.lane.b32.xlu0 %v657, 40
    %v747 = vpop.permute.xlu0 %746
    %vm750 = vcmask 392517
    %751 = vst.msk [vmem:[#allocation8 - $0x5] sm:$0xe0] %vm750, %v745
    %vm752 = vcmask 385344
    %753 = vst.msk [vmem:[#allocation8 + $0x3] sm:$0x1] %vm752, %v747
    %v754 = vsel %vm715, %v641, %v626
    %v755 = vsel %vm642, %v647, %v644
    %756 = vrot.lane.b32.xlu0 %v754, 96
    %v757 = vpop.permute.xlu0 %756
    %758 = vrot.lane.b32.xlu0 %v755, 96
    %v759 = vpop.permute.xlu0 %758
    %vm762 = vcmask 917254
    %763 = vst.msk [vmem:[#allocation7 - $0x6] sm:$0xc0] %vm762, %v757
    %vm764 = vcmask 911104
    %765 = vst.msk [vmem:[#allocation7 + $0x2] sm:$0x3] %vm764, %v759
    %v766 = vsel %vm715, %v653, %v362
    %v767 = vsel %vm642, %v657, %v655
    %768 = vrot.lane.b32.xlu0 %v766, 48
    %v769 = vpop.permute.xlu0 %768
    %770 = vrot.lane.b32.xlu0 %v767, 48
    %v771 = vpop.permute.xlu0 %770
    %vm774 = vcmask 458118
    %775 = vst.msk [vmem:[#allocation8 - $0x6] sm:$0xc0] %vm774, %v769
    %vm776 = vcmask 451968
    %777 = vst.msk [vmem:[#allocation8 + $0x2] sm:$0x3] %vm776, %v771
    %v778 = vsel %vm642, %v644, %v641
    %v779 = vsel %vm645, %v647, %v778
    %780 = vrot.lane.b32.xlu0 %v626, 112
    %v781 = vpop.permute.xlu0 %780
    %782 = vrot.lane.b32.xlu0 %v779, 112
    %v783 = vpop.permute.xlu0 %782
    %vm786 = vcmask 1048455
    %787 = vst.msk [vmem:[#allocation7 - $0x7] sm:$0x80] %vm786, %v781
    %vm788 = vcmask 1043328
    %789 = vst.msk [vmem:[#allocation7 + $0x1] sm:$0x7] %vm788, %v783
    %v790 = vsel %vm642, %v655, %v653
    %v791 = vsel %vm645, %v657, %v790
    %792 = vrot.lane.b32.xlu0 %v362, 56
    %v793 = vpop.permute.xlu0 %792
    %794 = vrot.lane.b32.xlu0 %v791, 56
    %v795 = vpop.permute.xlu0 %794
    %vm798 = vcmask 523719
    %799 = vst.msk [vmem:[#allocation8 - $0x7] sm:$0x80] %vm798, %v793
    %vm800 = vcmask 518592
    %801 = vst.msk [vmem:[#allocation8 + $0x1] sm:$0x7] %vm800, %v795
    // Predicated region
    $region26: #{tpu_custom_call.1} parent=1 // pred_check
      _
    $region27: #{tpu_custom_call.1} parent=1 // pred_check_branch
      %803 = sbr.rel (0) target = $region29
    $region28: #{tpu_custom_call.1} parent=1 // pred_region
      %805 = vsyncadd [#allocation4], 0
      %s807 = sshll.u32 [#allocation7], 4
      %s808 = int_to_ptr.vmem [resolvable:$true] %s807
      %s809 = sshll.u32 %s4, 4
      %s810 = int_to_ptr.hbm [resolvable:$true] %s809
      %812 = dma.vmem_to_hbm [thread:$0]  %s808, 64, %s810, [#allocation4]
    $region29: #{tpu_custom_call.1} parent=1 // pred_fallthru
      _
    // Predicated region
    $region30: #{tpu_custom_call.1} parent=1 // pred_check
      _
    $region31: #{tpu_custom_call.1} parent=1 // pred_check_branch
      %814 = sbr.rel (0) target = $region33
    $region32: #{tpu_custom_call.1} parent=1 // pred_region
      %816 = vsyncadd [#allocation9], 0
      %s818 = sshll.u32 [#allocation8], 4
      %s819 = int_to_ptr.vmem [resolvable:$true] %s818
      %s820 = sshll.u32 %s5, 4
      %s821 = int_to_ptr.hbm [resolvable:$true] %s820
      %823 = dma.vmem_to_hbm [thread:$0]  %s819, 64, %s821, [#allocation9]
    $region33: #{tpu_custom_call.1} parent=1 // pred_fallthru
      _
    // Predicated region
    $region34: #{tpu_custom_call.1} parent=1 // pred_check
      _
    $region35: #{tpu_custom_call.1} parent=1 // pred_check_branch
      %825 = sbr.rel (0) target = $region37
    $region36: #{tpu_custom_call.1} parent=1 // pred_region
      %827 = dma.done [#allocation4], 64
    $region37: #{tpu_custom_call.1} parent=1 // pred_fallthru
      _
    // Predicated region
    $region38: #{tpu_custom_call.1} parent=1 // pred_check
      _
    $region39: #{tpu_custom_call.1} parent=1 // pred_check_branch
      %829 = sbr.rel (0) target = $region41
    $region40: #{tpu_custom_call.1} parent=1 // pred_region
      %831 = dma.done [#allocation9], 64
    $region41: #{tpu_custom_call.1} parent=1 // pred_fallthru
      _
    %832 = vsyncpa [#allocation3], 1
    %833 = vsyncpa [#allocation6], 1
    %834 = vsyncpa [#allocation4], 1
    %835 = vsyncpa [#allocation9], 1

</llo_original>
